<compile_context>
chip_gen: v7x
topology: tpu7x:2x2x1
jax: 0.10.0
libtpu: 0.0.40
codegen_flags: <defaults>
</compile_context>

<pallas_src>
import functools

import numpy as np
import jax
import jax.numpy as jnp
from jax.experimental import pallas as pl
from jax.experimental.pallas import tpu as pltpu


def _dilconv_kernel(x_ref, dw_ref, mask_ref, pw_ref, bias_ref, o_ref,
                    *, n_taps, shifts, needs_mask, C_in, C_out, HW):
    """One batch element, flattened-(H*W)-on-lanes layout.

    x_ref:    (C_in, HW)     flattened (possibly pre-padded) input
    dw_ref:   (C_in, k*k)    depthwise weights, tap index on lanes
    mask_ref: (k*k, HW)      1.0 where a tap reads an in-bounds pixel
    pw_ref:   (C_out, C_in)  pointwise 1x1 weights with BN scale folded in
    bias_ref: (C_out, 1)     fused BN bias
    o_ref:    (C_out, HW)    stride-1 full-grid output (lane-dense last dim)
    """
    # ReLU first (relu of the virtual zero padding is still zero).
    xr = jnp.maximum(x_ref[...].astype(jnp.float32), 0.0)
    dw = dw_ref[...].astype(jnp.float32)          # hoisted parameter loads
    masks = mask_ref[...]
    pw = pw_ref[...].astype(jnp.float32)

    # Depthwise dilated conv: k*k taps, each one lane-roll (XLU) + FMA (VPU).
    acc = jnp.zeros((C_in, HW), jnp.float32)
    for t in range(n_taps):
        sh = shifts[t]
        rolled = xr if sh == 0 else pltpu.roll(xr, shift=sh, axis=1)
        if needs_mask[t]:
            rolled = rolled * masks[t:t + 1, :]    # (1, HW) sublane-bcast
        acc = acc + rolled * dw[:, t:t + 1]        # (C_in, 1) lane-bcast

    # Pointwise 1x1 conv + BN affine on the VPU (channels far too small for
    # the MXU).  Output stays (C_out, HW) -> lane-dense unmasked stores.
    y = jnp.zeros((C_out, HW), jnp.float32)
    for ci in range(C_in):
        y = y + pw[:, ci:ci + 1] * acc[ci:ci + 1, :]
    y = y + bias_ref[...]
    o_ref[...] = y.astype(o_ref.dtype)


def dilconv_forward(x, dw_w, pw_w, gamma, beta, running_mean, running_var,
                    *, kernel_size, stride, padding, dilation, eps=1e-5):
    """DilConv forward.  x: (N, C_in, H, W) NCHW -> (N, C_out, H_out, W_out).

    dw_w: (C_in, 1, k, k) depthwise weight (torch layout)
    pw_w: (C_out, C_in, 1, 1) pointwise weight (torch layout)
    BatchNorm runs in inference mode with the given running statistics.
    """
    N, C_in, H, W = x.shape
    C_out = pw_w.shape[0]
    k, d, s, p = kernel_size, dilation, stride, padding
    H_out = (H + 2 * p - d * (k - 1) - 1) // s + 1
    W_out = (W + 2 * p - d * (k - 1) - 1) // s + 1

    # "Same-size" configs (the ones DilConv is instantiated with) need no
    # wrapper padding: the padding is handled by in-kernel masks.  Other
    # configs fall back to a single wrapper-side zero-pad.
    same = (2 * p == d * (k - 1))
    if same:
        Hf, Wf, vp = H, W, p
        x_flat = x.reshape(N, C_in, H * W)                     # free reshape
    else:
        Hf, Wf, vp = H + 2 * p, W + 2 * p, 0
        x_flat = jnp.pad(
            x, ((0, 0), (0, 0), (p, p), (p, p))).reshape(N, C_in, Hf * Wf)
    HW = Hf * Wf

    # Static per-tap lane-roll shifts and validity masks (plain numpy).
    ho = np.arange(Hf)[:, None]
    wo = np.arange(Wf)[None, :]
    shifts, needs_mask, mask_rows = [], [], []
    for kh in range(k):
        for kw in range(k):
            off_h, off_w = kh * d - vp, kw * d - vp
            off = off_h * Wf + off_w
            shifts.append(int((-off) % HW))
            m = ((ho + off_h >= 0) & (ho + off_h < Hf) &
                 (wo + off_w >= 0) & (wo + off_w < Wf))
            needs_mask.append(not bool(m.all()))
            mask_rows.append(m.reshape(HW).astype(np.float32))
    mask = jnp.asarray(np.stack(mask_rows, axis=0))            # (k*k, HW)

    # Parameter repacking: fold the BN scale into the pointwise weights.
    dw = dw_w[:, 0].reshape(C_in, k * k)                       # (C_in, k*k)
    scale = gamma / jnp.sqrt(running_var + eps)                # (C_out,)
    pw_scaled = pw_w[:, :, 0, 0] * scale[:, None]              # (C_out, C_in)
    bias = (beta - running_mean * scale).reshape(C_out, 1)     # (C_out, 1)

    kernel = functools.partial(
        _dilconv_kernel, n_taps=k * k, shifts=tuple(shifts),
        needs_mask=tuple(needs_mask), C_in=C_in, C_out=C_out, HW=HW)

    y = pl.pallas_call(
        kernel,
        out_shape=jax.ShapeDtypeStruct((N, C_out, HW), x.dtype),
        grid=(N,),
        in_specs=[
            pl.BlockSpec((pl.Squeezed(), C_in, HW), lambda n: (n, 0, 0)),
            pl.BlockSpec((C_in, k * k), lambda n: (0, 0)),
            pl.BlockSpec((k * k, HW), lambda n: (0, 0)),
            pl.BlockSpec((C_out, C_in), lambda n: (0, 0)),
            pl.BlockSpec((C_out, 1), lambda n: (0, 0)),
        ],
        out_specs=pl.BlockSpec((pl.Squeezed(), C_out, HW),
                               lambda n: (n, 0, 0)),
        compiler_params=pltpu.CompilerParams(
            dimension_semantics=("parallel",)),
    )(x_flat, dw, mask, pw_scaled, bias)

    y = y.reshape(N, C_out, Hf, Wf)                            # free reshape
    if s > 1 or Hf != H_out or Wf != W_out:
        # Stride > 1 and/or non-"same" configs: subsample/crop the stride-1
        # full-grid result (conv with stride s == subsampled stride-1 conv).
        y = y[:, :, :(H_out - 1) * s + 1:s, :(W_out - 1) * s + 1:s]
    return y


def dilconv_reference(x, dw_w4, pw_w4, gamma, beta, run_mean, run_var, eps,
                      *, stride, padding, dilation):
    """Pure-JAX reference mirroring the PyTorch forward (eval-mode BN)."""
    xr = jnp.maximum(x, 0.0)
    dw = jax.lax.conv_general_dilated(
        xr, dw_w4, window_strides=(stride, stride),
        padding=[(padding, padding), (padding, padding)],
        rhs_dilation=(dilation, dilation),
        dimension_numbers=('NCHW', 'OIHW', 'NCHW'),
        feature_group_count=x.shape[1])
    pw = jax.lax.conv_general_dilated(
        dw, pw_w4, window_strides=(1, 1), padding=[(0, 0), (0, 0)],
        dimension_numbers=('NCHW', 'OIHW', 'NCHW'))
    inv = gamma / jnp.sqrt(run_var + eps)
    return pw * inv[None, :, None, None] + \
        (beta - run_mean * inv)[None, :, None, None]


if __name__ == "__main__":
    # DilConv(C_in=4, C_out=8, kernel_size=3, stride=1, padding=2, dilation=2)
    N, C_in, C_out, H, W = 2, 4, 8, 16, 16
    kernel_size, stride, padding, dilation = 3, 1, 2, 2
    eps = 1e-5

    key = jax.random.PRNGKey(0)
    k1, k2, k3, k4, k5 = jax.random.split(key, 5)
    x = jax.random.normal(k1, (N, C_in, H, W), jnp.float32)
    # Depthwise weight: torch shape (C_in, 1, k, k); pointwise: (C_out, C_in, 1, 1)
    dw_w4 = 0.3 * jax.random.normal(k2, (C_in, 1, kernel_size, kernel_size),
                                    jnp.float32)
    pw_w4 = 0.3 * jax.random.normal(k3, (C_out, C_in, 1, 1), jnp.float32)
    gamma = 1.0 + 0.1 * jax.random.normal(k4, (C_out,), jnp.float32)
    beta = 0.1 * jax.random.normal(k5, (C_out,), jnp.float32)
    running_mean = jnp.zeros((C_out,), jnp.float32)  # PyTorch BN init defaults
    running_var = jnp.ones((C_out,), jnp.float32)

    out = dilconv_forward(x, dw_w4, pw_w4, gamma, beta,
                          running_mean, running_var,
                          kernel_size=kernel_size, stride=stride,
                          padding=padding, dilation=dilation, eps=eps)
    out = jax.block_until_ready(out)

    ref = dilconv_reference(x, dw_w4, pw_w4, gamma, beta,
                            running_mean, running_var, eps,
                            stride=stride, padding=padding, dilation=dilation)
    ref = jax.block_until_ready(ref)

    assert out.shape == ref.shape == (N, C_out, H, W), (out.shape, ref.shape)
    assert jnp.allclose(out, ref, atol=1e-4, rtol=1e-4), \
        float(jnp.max(jnp.abs(out - ref)))
    print("KERNEL_OK")
</pallas_src>

<mosaic_0001>
module attributes {stable_mosaic.version = 11 : i64} {
  func.func @_dilconv_kernel(%arg0: i32, %arg1: memref<1x4x256xf32, #tpu.memory_space<vmem>>, %arg2: memref<4x9xf32, #tpu.memory_space<vmem>>, %arg3: memref<9x256xf32, #tpu.memory_space<vmem>>, %arg4: memref<8x4xf32, #tpu.memory_space<vmem>>, %arg5: memref<8x1xf32, #tpu.memory_space<vmem>>, %arg6: memref<1x8x256xf32, #tpu.memory_space<vmem>>) attributes {dimension_semantics = [#tpu.dimension_semantics<parallel>], iteration_bounds = array<i64: 2>, scalar_prefetch = 0 : i64, scratch_operands = 0 : i64, tpu.core_type = #tpu.core_type<tc>, window_params = [{transform_indices = @transform_0, window_bounds = array<i64: 1, 4, 256>}, {pipeline_mode = #tpu.pipeline_mode<synchronous>, transform_indices = @transform_1, window_bounds = array<i64: 4, 9>}, {pipeline_mode = #tpu.pipeline_mode<synchronous>, transform_indices = @transform_2, window_bounds = array<i64: 9, 256>}, {pipeline_mode = #tpu.pipeline_mode<synchronous>, transform_indices = @transform_3, window_bounds = array<i64: 8, 4>}, {pipeline_mode = #tpu.pipeline_mode<synchronous>, transform_indices = @transform_4, window_bounds = array<i64: 8, 1>}, {transform_indices = @transform_5, window_bounds = array<i64: 1, 8, 256>}]} {
    %c0 = arith.constant 0 : index
    %c0_0 = arith.constant 0 : index
    %c0_1 = arith.constant 0 : index
    %0 = vector.load %arg1[%c0, %c0_0, %c0_1] : memref<1x4x256xf32, #tpu.memory_space<vmem>>, vector<1x4x256xf32>
    %1 = vector.shape_cast %0 : vector<1x4x256xf32> to vector<4x256xf32>
    %cst = arith.constant 0.000000e+00 : f32
    %2 = vector.broadcast %cst : f32 to vector<4x256xf32>
    %3 = arith.maximumf %1, %2 : vector<4x256xf32>
    %c0_2 = arith.constant 0 : index
    %c0_3 = arith.constant 0 : index
    %4 = vector.load %arg2[%c0_2, %c0_3] : memref<4x9xf32, #tpu.memory_space<vmem>>, vector<4x9xf32>
    %c0_4 = arith.constant 0 : index
    %c0_5 = arith.constant 0 : index
    %5 = vector.load %arg3[%c0_4, %c0_5] : memref<9x256xf32, #tpu.memory_space<vmem>>, vector<9x256xf32>
    %c0_6 = arith.constant 0 : index
    %c0_7 = arith.constant 0 : index
    %6 = vector.load %arg4[%c0_6, %c0_7] : memref<8x4xf32, #tpu.memory_space<vmem>>, vector<8x4xf32>
    %cst_8 = arith.constant 0.000000e+00 : f32
    %7 = vector.broadcast %cst_8 : f32 to vector<4x256xf32>
    %c34_i32 = arith.constant 34 : i32
    %8 = tpu.dynamic_rotate %3 by %c34_i32 dim 1 : vector<4x256xf32>, i32 -> vector<4x256xf32>
    %9 = vector.extract_strided_slice %5 {offsets = [0, 0], sizes = [1, 256], strides = [1, 1]} : vector<9x256xf32> to vector<1x256xf32>
    %10 = vector.broadcast %9 : vector<1x256xf32> to vector<4x256xf32>
    %11 = arith.mulf %8, %10 : vector<4x256xf32>
    %12 = vector.extract_strided_slice %4 {offsets = [0, 0], sizes = [4, 1], strides = [1, 1]} : vector<4x9xf32> to vector<4x1xf32>
    %13 = vector.broadcast %12 : vector<4x1xf32> to vector<4x256xf32>
    %14 = arith.mulf %11, %13 : vector<4x256xf32>
    %15 = arith.addf %7, %14 : vector<4x256xf32>
    %c32_i32 = arith.constant 32 : i32
    %16 = tpu.dynamic_rotate %3 by %c32_i32 dim 1 : vector<4x256xf32>, i32 -> vector<4x256xf32>
    %17 = vector.extract_strided_slice %5 {offsets = [1, 0], sizes = [1, 256], strides = [1, 1]} : vector<9x256xf32> to vector<1x256xf32>
    %18 = vector.broadcast %17 : vector<1x256xf32> to vector<4x256xf32>
    %19 = arith.mulf %16, %18 : vector<4x256xf32>
    %20 = vector.extract_strided_slice %4 {offsets = [0, 1], sizes = [4, 1], strides = [1, 1]} : vector<4x9xf32> to vector<4x1xf32>
    %21 = vector.broadcast %20 : vector<4x1xf32> to vector<4x256xf32>
    %22 = arith.mulf %19, %21 : vector<4x256xf32>
    %23 = arith.addf %15, %22 : vector<4x256xf32>
    %c30_i32 = arith.constant 30 : i32
    %24 = tpu.dynamic_rotate %3 by %c30_i32 dim 1 : vector<4x256xf32>, i32 -> vector<4x256xf32>
    %25 = vector.extract_strided_slice %5 {offsets = [2, 0], sizes = [1, 256], strides = [1, 1]} : vector<9x256xf32> to vector<1x256xf32>
    %26 = vector.broadcast %25 : vector<1x256xf32> to vector<4x256xf32>
    %27 = arith.mulf %24, %26 : vector<4x256xf32>
    %28 = vector.extract_strided_slice %4 {offsets = [0, 2], sizes = [4, 1], strides = [1, 1]} : vector<4x9xf32> to vector<4x1xf32>
    %29 = vector.broadcast %28 : vector<4x1xf32> to vector<4x256xf32>
    %30 = arith.mulf %27, %29 : vector<4x256xf32>
    %31 = arith.addf %23, %30 : vector<4x256xf32>
    %c2_i32 = arith.constant 2 : i32
    %32 = tpu.dynamic_rotate %3 by %c2_i32 dim 1 : vector<4x256xf32>, i32 -> vector<4x256xf32>
    %33 = vector.extract_strided_slice %5 {offsets = [3, 0], sizes = [1, 256], strides = [1, 1]} : vector<9x256xf32> to vector<1x256xf32>
    %34 = vector.broadcast %33 : vector<1x256xf32> to vector<4x256xf32>
    %35 = arith.mulf %32, %34 : vector<4x256xf32>
    %36 = vector.extract_strided_slice %4 {offsets = [0, 3], sizes = [4, 1], strides = [1, 1]} : vector<4x9xf32> to vector<4x1xf32>
    %37 = vector.broadcast %36 : vector<4x1xf32> to vector<4x256xf32>
    %38 = arith.mulf %35, %37 : vector<4x256xf32>
    %39 = arith.addf %31, %38 : vector<4x256xf32>
    %40 = vector.extract_strided_slice %4 {offsets = [0, 4], sizes = [4, 1], strides = [1, 1]} : vector<4x9xf32> to vector<4x1xf32>
    %41 = vector.broadcast %40 : vector<4x1xf32> to vector<4x256xf32>
    %42 = arith.mulf %3, %41 : vector<4x256xf32>
    %43 = arith.addf %39, %42 : vector<4x256xf32>
    %c254_i32 = arith.constant 254 : i32
    %44 = tpu.dynamic_rotate %3 by %c254_i32 dim 1 : vector<4x256xf32>, i32 -> vector<4x256xf32>
    %45 = vector.extract_strided_slice %5 {offsets = [5, 0], sizes = [1, 256], strides = [1, 1]} : vector<9x256xf32> to vector<1x256xf32>
    %46 = vector.broadcast %45 : vector<1x256xf32> to vector<4x256xf32>
    %47 = arith.mulf %44, %46 : vector<4x256xf32>
    %48 = vector.extract_strided_slice %4 {offsets = [0, 5], sizes = [4, 1], strides = [1, 1]} : vector<4x9xf32> to vector<4x1xf32>
    %49 = vector.broadcast %48 : vector<4x1xf32> to vector<4x256xf32>
    %50 = arith.mulf %47, %49 : vector<4x256xf32>
    %51 = arith.addf %43, %50 : vector<4x256xf32>
    %c226_i32 = arith.constant 226 : i32
    %52 = tpu.dynamic_rotate %3 by %c226_i32 dim 1 : vector<4x256xf32>, i32 -> vector<4x256xf32>
    %53 = vector.extract_strided_slice %5 {offsets = [6, 0], sizes = [1, 256], strides = [1, 1]} : vector<9x256xf32> to vector<1x256xf32>
    %54 = vector.broadcast %53 : vector<1x256xf32> to vector<4x256xf32>
    %55 = arith.mulf %52, %54 : vector<4x256xf32>
    %56 = vector.extract_strided_slice %4 {offsets = [0, 6], sizes = [4, 1], strides = [1, 1]} : vector<4x9xf32> to vector<4x1xf32>
    %57 = vector.broadcast %56 : vector<4x1xf32> to vector<4x256xf32>
    %58 = arith.mulf %55, %57 : vector<4x256xf32>
    %59 = arith.addf %51, %58 : vector<4x256xf32>
    %c224_i32 = arith.constant 224 : i32
    %60 = tpu.dynamic_rotate %3 by %c224_i32 dim 1 : vector<4x256xf32>, i32 -> vector<4x256xf32>
    %61 = vector.extract_strided_slice %5 {offsets = [7, 0], sizes = [1, 256], strides = [1, 1]} : vector<9x256xf32> to vector<1x256xf32>
    %62 = vector.broadcast %61 : vector<1x256xf32> to vector<4x256xf32>
    %63 = arith.mulf %60, %62 : vector<4x256xf32>
    %64 = vector.extract_strided_slice %4 {offsets = [0, 7], sizes = [4, 1], strides = [1, 1]} : vector<4x9xf32> to vector<4x1xf32>
    %65 = vector.broadcast %64 : vector<4x1xf32> to vector<4x256xf32>
    %66 = arith.mulf %63, %65 : vector<4x256xf32>
    %67 = arith.addf %59, %66 : vector<4x256xf32>
    %c222_i32 = arith.constant 222 : i32
    %68 = tpu.dynamic_rotate %3 by %c222_i32 dim 1 : vector<4x256xf32>, i32 -> vector<4x256xf32>
    %69 = vector.extract_strided_slice %5 {offsets = [8, 0], sizes = [1, 256], strides = [1, 1]} : vector<9x256xf32> to vector<1x256xf32>
    %70 = vector.broadcast %69 : vector<1x256xf32> to vector<4x256xf32>
    %71 = arith.mulf %68, %70 : vector<4x256xf32>
    %72 = vector.extract_strided_slice %4 {offsets = [0, 8], sizes = [4, 1], strides = [1, 1]} : vector<4x9xf32> to vector<4x1xf32>
    %73 = vector.broadcast %72 : vector<4x1xf32> to vector<4x256xf32>
    %74 = arith.mulf %71, %73 : vector<4x256xf32>
    %75 = arith.addf %67, %74 : vector<4x256xf32>
    %cst_9 = arith.constant 0.000000e+00 : f32
    %76 = vector.broadcast %cst_9 : f32 to vector<8x256xf32>
    %77 = vector.extract_strided_slice %6 {offsets = [0, 0], sizes = [8, 1], strides = [1, 1]} : vector<8x4xf32> to vector<8x1xf32>
    %78 = vector.extract_strided_slice %75 {offsets = [0, 0], sizes = [1, 256], strides = [1, 1]} : vector<4x256xf32> to vector<1x256xf32>
    %79 = vector.broadcast %77 : vector<8x1xf32> to vector<8x256xf32>
    %80 = vector.broadcast %78 : vector<1x256xf32> to vector<8x256xf32>
    %81 = arith.mulf %79, %80 : vector<8x256xf32>
    %82 = arith.addf %76, %81 : vector<8x256xf32>
    %83 = vector.extract_strided_slice %6 {offsets = [0, 1], sizes = [8, 1], strides = [1, 1]} : vector<8x4xf32> to vector<8x1xf32>
    %84 = vector.extract_strided_slice %75 {offsets = [1, 0], sizes = [1, 256], strides = [1, 1]} : vector<4x256xf32> to vector<1x256xf32>
    %85 = vector.broadcast %83 : vector<8x1xf32> to vector<8x256xf32>
    %86 = vector.broadcast %84 : vector<1x256xf32> to vector<8x256xf32>
    %87 = arith.mulf %85, %86 : vector<8x256xf32>
    %88 = arith.addf %82, %87 : vector<8x256xf32>
    %89 = vector.extract_strided_slice %6 {offsets = [0, 2], sizes = [8, 1], strides = [1, 1]} : vector<8x4xf32> to vector<8x1xf32>
    %90 = vector.extract_strided_slice %75 {offsets = [2, 0], sizes = [1, 256], strides = [1, 1]} : vector<4x256xf32> to vector<1x256xf32>
    %91 = vector.broadcast %89 : vector<8x1xf32> to vector<8x256xf32>
    %92 = vector.broadcast %90 : vector<1x256xf32> to vector<8x256xf32>
    %93 = arith.mulf %91, %92 : vector<8x256xf32>
    %94 = arith.addf %88, %93 : vector<8x256xf32>
    %95 = vector.extract_strided_slice %6 {offsets = [0, 3], sizes = [8, 1], strides = [1, 1]} : vector<8x4xf32> to vector<8x1xf32>
    %96 = vector.extract_strided_slice %75 {offsets = [3, 0], sizes = [1, 256], strides = [1, 1]} : vector<4x256xf32> to vector<1x256xf32>
    %97 = vector.broadcast %95 : vector<8x1xf32> to vector<8x256xf32>
    %98 = vector.broadcast %96 : vector<1x256xf32> to vector<8x256xf32>
    %99 = arith.mulf %97, %98 : vector<8x256xf32>
    %100 = arith.addf %94, %99 : vector<8x256xf32>
    %c0_10 = arith.constant 0 : index
    %c0_11 = arith.constant 0 : index
    %101 = vector.load %arg5[%c0_10, %c0_11] : memref<8x1xf32, #tpu.memory_space<vmem>>, vector<8x1xf32>
    %102 = vector.broadcast %101 : vector<8x1xf32> to vector<8x256xf32>
    %103 = arith.addf %100, %102 : vector<8x256xf32>
    %c0_12 = arith.constant 0 : index
    %c0_13 = arith.constant 0 : index
    %c0_14 = arith.constant 0 : index
    %104 = vector.load %arg6[%c0_12, %c0_13, %c0_14] : memref<1x8x256xf32, #tpu.memory_space<vmem>>, vector<1x8x256xf32>
    %105 = vector.shape_cast %104 : vector<1x8x256xf32> to vector<8x256xf32>
    %106 = vector.shape_cast %103 : vector<8x256xf32> to vector<1x8x256xf32>
    tpu.vector_store %arg6[%c0_12, %c0_13, %c0_14], %106 {strides = array<i32>} : memref<1x8x256xf32, #tpu.memory_space<vmem>>, vector<1x8x256xf32>,
    return
  }
  func.func @transform_0(%arg0: i32) -> (i32, i32, i32) {
    %c0_i32 = arith.constant 0 : i32
    %c0_i32_0 = arith.constant 0 : i32
    %c0_i32_1 = arith.constant 0 : i32
    return %arg0, %c0_i32, %c0_i32_0 : i32, i32, i32
  }
  func.func @transform_1(%arg0: i32) -> (i32, i32) {
    %c0_i32 = arith.constant 0 : i32
    %c0_i32_0 = arith.constant 0 : i32
    %c0_i32_1 = arith.constant 0 : i32
    return %c0_i32, %c0_i32_0 : i32, i32
  }
  func.func @transform_2(%arg0: i32) -> (i32, i32) {
    %c0_i32 = arith.constant 0 : i32
    %c0_i32_0 = arith.constant 0 : i32
    %c0_i32_1 = arith.constant 0 : i32
    return %c0_i32, %c0_i32_0 : i32, i32
  }
  func.func @transform_3(%arg0: i32) -> (i32, i32) {
    %c0_i32 = arith.constant 0 : i32
    %c0_i32_0 = arith.constant 0 : i32
    %c0_i32_1 = arith.constant 0 : i32
    return %c0_i32, %c0_i32_0 : i32, i32
  }
  func.func @transform_4(%arg0: i32) -> (i32, i32) {
    %c0_i32 = arith.constant 0 : i32
    %c0_i32_0 = arith.constant 0 : i32
    %c0_i32_1 = arith.constant 0 : i32
    return %c0_i32, %c0_i32_0 : i32, i32
  }
  func.func @transform_5(%arg0: i32) -> (i32, i32, i32) {
    %c0_i32 = arith.constant 0 : i32
    %c0_i32_0 = arith.constant 0 : i32
    %c0_i32_1 = arith.constant 0 : i32
    return %arg0, %c0_i32, %c0_i32_0 : i32, i32, i32
  }
}

</mosaic_0001>

<llo_original>
// kernel: tpu_custom_call.1
$region0: #{tpu_custom_call.1}
  #allocation0 [shape = 'u32[]', space=smem, size = 0x4, offset = 0x4, fixed_abs, tag = 'smem constant byte address 0x4 - core index']
  #allocation1 [shape = 'u32[144,128]{1,0:T(1,128)}', space=vmem, size = 0x12000, scoped, tag = 'internal scratch']
  %s0 = inlined_call_operand.vmem [shape: f32[2,4,256], index: 0, kind: input, shape index: {}]
  %s1 = inlined_call_operand.vmem [shape: f32[4,9], index: 1, kind: input, shape index: {}]
  %s2 = inlined_call_operand.hbm [shape: f32[9,256], index: 2, kind: input, shape index: {}]
  %s3 = inlined_call_operand.vmem [shape: f32[8,4], index: 3, kind: input, shape index: {}]
  %s4 = inlined_call_operand.vmem [shape: f32[8,1], index: 4, kind: input, shape index: {}]
  %s5 = inlined_call_operand.hbm [shape: f32[2,8,256], index: 5, kind: output, shape index: {}]
  %s6 = sld [smem:[#allocation0]]
  $region57: #{tpu_custom_call.1} parent=0
    _
  %s8 = ssub.s32 1, %s6
  %s9 = scalar_select 0, %s8, %s6
  $region1: #{tpu_custom_call.1} parent=0
    #allocation2 [shape = 'u8[16384]{0}', space=vmem, size = 0x4000, scoped, tag = 'input window, operand 2, single buffered']
    #allocation3 [shape = 's32[2]{0}', space=sflag, size = 0x8, scoped, tag = 'scoped memory for tpu_custom_call.1']
    #allocation4 [shape = 's32[2]{0}', space=sflag, size = 0x8, scoped, tag = 'scoped memory for tpu_custom_call.1']
    #allocation5 [shape = 'u8[16384]{0}', space=vmem, size = 0x4000, scoped, tag = 'output window, operand 0']
    %10 = vsyncpa [#allocation3], 0
    %11 = vsyncpa [#allocation4], 0
    %s12 = scalar_lea.sflag [#allocation4], 1
    %13 = vsyncpa %s12, 0
    loop: start=0, step=1, limit=4
    $region2: #{tpu_custom_call.1} parent=1 // loop_pre_header
      _
    $region3: #{tpu_custom_call.1} parent=1 // loop_header
      %s15 = sphi 0, %s19
      %p16 = scmp.ge.s32.totalorder %s15, 4
      %s25 = sphi 0, %s27
      %s28 = sphi 0, %s25
      %s29 = sphi 0, %s28
      %s45 = sphi 0, %s29
      %s49 = sphi 0, %s49
      %s51 = sphi 0, %s49
      %s52 = sphi 0, %s51
      %s66 = sphi 0, %s52
      %s70 = sphi 0, %s70
      %s72 = sphi 0, %s70
      %s73 = sphi 0, %s72
      %s87 = sphi 0, %s73
      %s91 = sphi 0, %s91
      %s93 = sphi 0, %s91
      %s94 = sphi 0, %s93
      %s108 = sphi 0, %s94
      %s112 = sphi 0, %s112
      %s114 = sphi 0, %s112
      %s115 = sphi 0, %s114
      %s129 = sphi 0, %s115
      %s135 = sphi 0, %s137
      %s138 = sphi 0, %s135
      %s139 = sphi 0, %s138
      %s155 = sphi 0, %s139
    $region4: #{tpu_custom_call.1} parent=1 // loop_header_branch
      %18 = sbr.rel (%p16) target = $region8
    $region5: #{tpu_custom_call.1} parent=1 // loop_body
      %s20 = ssub.s32 %s15, 1
      %s21 = ssub.s32 %s15, 2
      %s22 = sadd.s32 %s15, 1
      %s23 = ssub.s32 %s15, %s22
      %p24 = scmp.eq.s32.totalorder %s23, 0
      %s26 = sadd.s32 %s25, 1
      %s27 = scalar_select %p24, %s25, %s26
      %p30 = pneg %p24
      %p31 = scmp.eq.s32.totalorder %s15, 1
      %p32 = por %p30, %p31
      %p33 = scmp.ne.s32.totalorder %s25, %s28
      %p34 = scmp.eq.s32.totalorder %s15, 0
      %p35 = por %p33, %p34
      %p36 = scmp.ne.s32.totalorder %s25, %s28
      %p37 = scmp.eq.s32.totalorder %s20, 1
      %p38 = por %p36, %p37
      %p39 = scmp.ne.s32.totalorder %s28, %s29
      %p40 = scmp.eq.s32.totalorder %s20, 0
      %p41 = por %p39, %p40
      %p42 = scmp.ne.s32.totalorder %s28, %s29
      %p43 = scmp.eq.s32.totalorder %s21, 1
      %p44 = por %p42, %p43
      %p46 = scmp.ne.s32.totalorder %s29, %s45
      %p47 = scmp.eq.s32.totalorder %s21, 0
      %p48 = por %p46, %p47
      %s50 = sadd.s32 %s49, 1
      %p53 = scmp.eq.s32.totalorder %s15, 1
      %p54 = scmp.ne.s32.totalorder %s49, %s51
      %p55 = scmp.eq.s32.totalorder %s15, 0
      %p56 = por %p54, %p55
      %p57 = scmp.ne.s32.totalorder %s49, %s51
      %p58 = scmp.eq.s32.totalorder %s20, 1
      %p59 = por %p57, %p58
      %p60 = scmp.ne.s32.totalorder %s51, %s52
      %p61 = scmp.eq.s32.totalorder %s20, 0
      %p62 = por %p60, %p61
      %p63 = scmp.ne.s32.totalorder %s51, %s52
      %p64 = scmp.eq.s32.totalorder %s21, 1
      %p65 = por %p63, %p64
      %p67 = scmp.ne.s32.totalorder %s52, %s66
      %p68 = scmp.eq.s32.totalorder %s21, 0
      %p69 = por %p67, %p68
      %s71 = sadd.s32 %s70, 1
      %p74 = scmp.eq.s32.totalorder %s15, 1
      %p75 = scmp.ne.s32.totalorder %s70, %s72
      %p76 = scmp.eq.s32.totalorder %s15, 0
      %p77 = por %p75, %p76
      %p78 = scmp.ne.s32.totalorder %s70, %s72
      %p79 = scmp.eq.s32.totalorder %s20, 1
      %p80 = por %p78, %p79
      %p81 = scmp.ne.s32.totalorder %s72, %s73
      %p82 = scmp.eq.s32.totalorder %s20, 0
      %p83 = por %p81, %p82
      %p84 = scmp.ne.s32.totalorder %s72, %s73
      %p85 = scmp.eq.s32.totalorder %s21, 1
      %p86 = por %p84, %p85
      %p88 = scmp.ne.s32.totalorder %s73, %s87
      %p89 = scmp.eq.s32.totalorder %s21, 0
      %p90 = por %p88, %p89
      %s92 = sadd.s32 %s91, 1
      %p95 = scmp.eq.s32.totalorder %s15, 1
      %p96 = scmp.ne.s32.totalorder %s91, %s93
      %p97 = scmp.eq.s32.totalorder %s15, 0
      %p98 = por %p96, %p97
      %p99 = scmp.ne.s32.totalorder %s91, %s93
      %p100 = scmp.eq.s32.totalorder %s20, 1
      %p101 = por %p99, %p100
      %p102 = scmp.ne.s32.totalorder %s93, %s94
      %p103 = scmp.eq.s32.totalorder %s20, 0
      %p104 = por %p102, %p103
      %p105 = scmp.ne.s32.totalorder %s93, %s94
      %p106 = scmp.eq.s32.totalorder %s21, 1
      %p107 = por %p105, %p106
      %p109 = scmp.ne.s32.totalorder %s94, %s108
      %p110 = scmp.eq.s32.totalorder %s21, 0
      %p111 = por %p109, %p110
      %s113 = sadd.s32 %s112, 1
      %p116 = scmp.eq.s32.totalorder %s15, 1
      %p117 = scmp.ne.s32.totalorder %s112, %s114
      %p118 = scmp.eq.s32.totalorder %s15, 0
      %p119 = por %p117, %p118
      %p120 = scmp.ne.s32.totalorder %s112, %s114
      %p121 = scmp.eq.s32.totalorder %s20, 1
      %p122 = por %p120, %p121
      %p123 = scmp.ne.s32.totalorder %s114, %s115
      %p124 = scmp.eq.s32.totalorder %s20, 0
      %p125 = por %p123, %p124
      %p126 = scmp.ne.s32.totalorder %s114, %s115
      %p127 = scmp.eq.s32.totalorder %s21, 1
      %p128 = por %p126, %p127
      %p130 = scmp.ne.s32.totalorder %s115, %s129
      %p131 = scmp.eq.s32.totalorder %s21, 0
      %p132 = por %p130, %p131
      %s133 = ssub.s32 %s15, %s22
      %p134 = scmp.eq.s32.totalorder %s133, 0
      %s136 = sadd.s32 %s135, 1
      %s137 = scalar_select %p134, %s135, %s136
      %p140 = pneg %p134
      %p141 = scmp.eq.s32.totalorder %s15, 1
      %p142 = por %p140, %p141
      %p143 = scmp.ne.s32.totalorder %s135, %s138
      %p144 = scmp.eq.s32.totalorder %s15, 0
      %p145 = por %p143, %p144
      %p146 = scmp.ne.s32.totalorder %s135, %s138
      %p147 = scmp.eq.s32.totalorder %s20, 1
      %p148 = por %p146, %p147
      %p149 = scmp.ne.s32.totalorder %s138, %s139
      %p150 = scmp.eq.s32.totalorder %s20, 0
      %p151 = por %p149, %p150
      %p152 = scmp.ne.s32.totalorder %s138, %s139
      %p153 = scmp.eq.s32.totalorder %s21, 1
      %p154 = por %p152, %p153
      %p156 = scmp.ne.s32.totalorder %s139, %s155
      %p157 = scmp.eq.s32.totalorder %s21, 0
      %p158 = por %p156, %p157
      %p159 = scmp.le.s32.totalorder 1, %s15
      %p160 = scmp.lt.s32.totalorder %s15, 3
      %p161 = pnand %p159, %p160
      %p162 = pneg %p161
      // Predicated region
      $region9: #{tpu_custom_call.1} parent=5 // pred_check
        _
      $region10: #{tpu_custom_call.1} parent=5 // pred_check_branch
        %164 = sbr.rel (%p161) target = $region12
      $region11: #{tpu_custom_call.1} parent=5 // pred_region
        %s165 = ssub.s32 %s15, 1
        // Predicated region
        $region13: #{tpu_custom_call.1} parent=11 // pred_check
          %p166 = pneg %p62
        $region14: #{tpu_custom_call.1} parent=11 // pred_check_branch
          %168 = sbr.rel (%p166) target = $region16
        $region15: #{tpu_custom_call.1} parent=11 // pred_region
          _
        $region16: #{tpu_custom_call.1} parent=11 // pred_fallthru
          _
        // Predicated region
        $region17: #{tpu_custom_call.1} parent=11 // pred_check
          %p169 = pneg %p83
        $region18: #{tpu_custom_call.1} parent=11 // pred_check_branch
          %171 = sbr.rel (%p169) target = $region20
        $region19: #{tpu_custom_call.1} parent=11 // pred_region
          %s173 = ssub.s32 512, 512
          %174 = vsyncadd [#allocation3], %s173
          %s175 = sshll.u32 [#allocation2], 4
          %s176 = int_to_ptr.vmem [resolvable:$true] %s175
          %181 = dma.hbm_to_vmem [thread:$0]  %s2, 512, %s176, [#allocation3], 256, 256, 16
        $region20: #{tpu_custom_call.1} parent=11 // pred_fallthru
          _
        // Predicated region
        $region21: #{tpu_custom_call.1} parent=11 // pred_check
          %p182 = pneg %p104
        $region22: #{tpu_custom_call.1} parent=11 // pred_check_branch
          %184 = sbr.rel (%p182) target = $region24
        $region23: #{tpu_custom_call.1} parent=11 // pred_region
          _
        $region24: #{tpu_custom_call.1} parent=11 // pred_fallthru
          _
        // Predicated region
        $region25: #{tpu_custom_call.1} parent=11 // pred_check
          %p185 = pneg %p125
        $region26: #{tpu_custom_call.1} parent=11 // pred_check_branch
          %187 = sbr.rel (%p185) target = $region28
        $region27: #{tpu_custom_call.1} parent=11 // pred_region
          _
        $region28: #{tpu_custom_call.1} parent=11 // pred_fallthru
          _
      $region12: #{tpu_custom_call.1} parent=5 // pred_fallthru
        _
      %p188 = scmp.lt.s32.totalorder %s15, 2
      // Predicated region
      $region29: #{tpu_custom_call.1} parent=5 // pred_check
        %p189 = pneg %p188
      $region30: #{tpu_custom_call.1} parent=5 // pred_check_branch
        %191 = sbr.rel (%p189) target = $region32
      $region31: #{tpu_custom_call.1} parent=5 // pred_region
        // Predicated region
        $region33: #{tpu_custom_call.1} parent=31 // pred_check
          %p192 = pneg %p35
        $region34: #{tpu_custom_call.1} parent=31 // pred_check_branch
          %194 = sbr.rel (%p192) target = $region36
        $region35: #{tpu_custom_call.1} parent=31 // pred_region
          %p195 = scmp.lt.s32.totalorder %s15, 1
          %s196 = scalar_select %p195, %s15, 1
          %s197 = smul.addr %s196, 2
          %s198 = smul.addr %s197, 4
          %s199 = scalar_lea.vmem %s0, %s198
        $region36: #{tpu_custom_call.1} parent=31 // pred_fallthru
          _
      $region32: #{tpu_custom_call.1} parent=5 // pred_fallthru
        _
      %p200 = scmp.le.s32.totalorder 1, %s15
      %p201 = scmp.lt.s32.totalorder %s15, 3
      %p202 = pnand %p200, %p201
      %p203 = pneg %p202
      // Predicated region
      $region37: #{tpu_custom_call.1} parent=5 // pred_check
        _
      $region38: #{tpu_custom_call.1} parent=5 // pred_check_branch
        %205 = sbr.rel (%p202) target = $region40
      $region39: #{tpu_custom_call.1} parent=5 // pred_region
        %s206 = ssub.s32 %s15, 1
        // Predicated region
        $region41: #{tpu_custom_call.1} parent=39 // pred_check
          %p207 = pneg %p83
        $region42: #{tpu_custom_call.1} parent=39 // pred_check_branch
          %209 = sbr.rel (%p207) target = $region44
        $region43: #{tpu_custom_call.1} parent=39 // pred_region
          %210 = dma.done [#allocation3], 512
        $region44: #{tpu_custom_call.1} parent=39 // pred_fallthru
          _
        %p211 = scmp.lt.s32.totalorder %s20, 1
        %s212 = scalar_select %p211, %s20, 1
        %s213 = smul.addr %s212, 2
        %s214 = smul.addr %s213, 4
        %s215 = scalar_lea.vmem %s0, %s214
        %p216 = pneg %p41
        %p217 = pneg %p38
        %p218 = pneg %p62
        %p219 = pneg %p59
        %p220 = pneg %p83
        %p221 = pneg %p80
        %p222 = pneg %p104
        %p223 = pneg %p101
        %p224 = pneg %p125
        %p225 = pneg %p122
        %p226 = pneg %p151
        %p227 = pneg %p148
        %s228 = sand.u32 %s138, 1
        %s229 = scalar_lea.sflag [#allocation4], %s228
        %s230 = sand.u32 %s138, 1
        %s231 = smul.addr %s230, 16
        %s232 = scalar_lea.vmem [#allocation5], %s231
        %p233 = scmp.lt.s32.totalorder %s20, 1
        %s234 = scalar_select %p233, %s20, 1
        %s235 = smul.addr %s234, 2
        %s236 = smul.addr %s235, 4
        %s237 = scalar_lea.vmem %s0, %s236
        %v238 = vld [vmem:[%s237] sm:$0xff]
        %v239 = vmax.f32 %v238, 0.0
        %v240 = vld [vmem:[%s1] sm:$0xf]
        %v241 = vld [vmem:[#allocation2] sm:$0xff]
        %v242 = vld [vmem:[#allocation2 + $0x8] sm:$0xff]
        %v243 = vld [vmem:[#allocation2 + $0x10] sm:$0x1]
        %v244 = vld [vmem:[#allocation2 + $0x18] sm:$0x1]
        %v245 = vld [vmem:[%s3] sm:$0xff]
        %v247 = vcombine.high %v239, %v239
        %249 = vrot.lane.b32.xlu0 %v239, 34
        %v250 = vpop.permute.xlu0 %249
        %251 = vrot.lane.b32.xlu0 %v247, 34
        %v252 = vpop.permute.xlu0 %251
        %v253 = vlaneseq
        %v254 = vand.u32 %v253, 127
        %vm255 = vcmp.lt.s32.totalorder %v254, 34
        %v256 = vsel %vm255, %v250, %v252
        %v257 = vsel %vm255, %v252, %v250
        %v258 = vlaneseq
        %v259 = vshrl.u32 %v258, 7
        %v260 = vsub.s32 0, %v259
        %v261 = vrot.slane %v241, %v260
        %v262 = vlaneseq
        %v263 = vshrl.u32 %v262, 7
        %v264 = vsub.s32 0, %v263
        %v265 = vrot.slane %v242, %v264
        %v266 = vmul.f32 %v257, %v261
        %v267 = vmul.f32 %v256, %v265
        %269 = vset.pattern.permute.xlu0 0
        %270 = vperm.xlu0 %269, %v240
        %v271 = vpop.permute.xlu0 %270
        %v273 = vmul.f32 %v266, %v271
        %v274 = vmul.f32 %v267, %v271
        %v275 = vadd.f32 %v273, 0.0
        %v276 = vadd.f32 %v274, 0.0
        %277 = vrot.lane.b32.xlu0 %v239, 32
        %v278 = vpop.permute.xlu0 %277
        %279 = vrot.lane.b32.xlu0 %v247, 32
        %v280 = vpop.permute.xlu0 %279
        %vm281 = vcmp.lt.s32.totalorder %v254, 32
        %v282 = vsel %vm281, %v278, %v280
        %v283 = vsel %vm281, %v280, %v278
        %v284 = vlaneseq
        %v285 = vshrl.u32 %v284, 7
        %v286 = vsub.s32 1, %v285
        %v287 = vrot.slane %v241, %v286
        %v288 = vlaneseq
        %v289 = vshrl.u32 %v288, 7
        %v290 = vsub.s32 1, %v289
        %v291 = vrot.slane %v242, %v290
        %v292 = vmul.f32 %v283, %v287
        %v293 = vmul.f32 %v282, %v291
        %294 = vset.pattern.permute.xlu0 1
        %295 = vperm.xlu0 %294, %v240
        %v296 = vpop.permute.xlu0 %295
        %v298 = vmul.f32 %v292, %v296
        %v299 = vmul.f32 %v293, %v296
        %v300 = vadd.f32 %v275, %v298
        %v301 = vadd.f32 %v276, %v299
        %302 = vrot.lane.b32.xlu0 %v239, 30
        %v303 = vpop.permute.xlu0 %302
        %304 = vrot.lane.b32.xlu0 %v247, 30
        %v305 = vpop.permute.xlu0 %304
        %vm306 = vcmp.lt.s32.totalorder %v254, 30
        %v307 = vsel %vm306, %v303, %v305
        %v308 = vsel %vm306, %v305, %v303
        %v309 = vlaneseq
        %v310 = vshrl.u32 %v309, 7
        %v311 = vsub.s32 2, %v310
        %v312 = vrot.slane %v241, %v311
        %v313 = vlaneseq
        %v314 = vshrl.u32 %v313, 7
        %v315 = vsub.s32 2, %v314
        %v316 = vrot.slane %v242, %v315
        %v317 = vmul.f32 %v308, %v312
        %v318 = vmul.f32 %v307, %v316
        %319 = vset.pattern.permute.xlu0 2
        %320 = vperm.xlu0 %319, %v240
        %v321 = vpop.permute.xlu0 %320
        %v323 = vmul.f32 %v317, %v321
        %v324 = vmul.f32 %v318, %v321
        %v325 = vadd.f32 %v300, %v323
        %v326 = vadd.f32 %v301, %v324
        %327 = vrot.lane.b32.xlu0 %v239, 2
        %v328 = vpop.permute.xlu0 %327
        %329 = vrot.lane.b32.xlu0 %v247, 2
        %v330 = vpop.permute.xlu0 %329
        %vm331 = vcmp.lt.s32.totalorder %v254, 2
        %v332 = vsel %vm331, %v328, %v330
        %v333 = vsel %vm331, %v330, %v328
        %v334 = vlaneseq
        %v335 = vshrl.u32 %v334, 7
        %v336 = vsub.s32 3, %v335
        %v337 = vrot.slane %v241, %v336
        %v338 = vlaneseq
        %v339 = vshrl.u32 %v338, 7
        %v340 = vsub.s32 3, %v339
        %v341 = vrot.slane %v242, %v340
        %v342 = vmul.f32 %v333, %v337
        %v343 = vmul.f32 %v332, %v341
        %344 = vset.pattern.permute.xlu0 3
        %345 = vperm.xlu0 %344, %v240
        %v346 = vpop.permute.xlu0 %345
        %v348 = vmul.f32 %v342, %v346
        %v349 = vmul.f32 %v343, %v346
        %v350 = vadd.f32 %v325, %v348
        %v351 = vadd.f32 %v326, %v349
        %352 = vset.pattern.permute.xlu0 4
        %353 = vperm.xlu0 %352, %v240
        %v354 = vpop.permute.xlu0 %353
        %v356 = vunpack.c.l.s4 839922192
        %v357 = vunpack.c.0.s8 %v356
        %v358 = vlaneseq
        %v359 = vshrl.u32 %v358, 7
        %v360 = vsub.s32 %v357, %v359
        %v361 = vrot.slane %v354, %v360
        %v363 = vmul.f32 %v239, %v361
        %v365 = vcombine.high %v363, %v363
        %v367 = vadd.f32 %v350, %v363
        %v368 = vadd.f32 %v351, %v365
        %369 = vrot.lane.b32.xlu0 %v239, 126
        %v370 = vpop.permute.xlu0 %369
        %371 = vrot.lane.b32.xlu0 %v247, 126
        %v372 = vpop.permute.xlu0 %371
        %vm373 = vcmp.lt.s32.totalorder %v254, 126
        %v374 = vsel %vm373, %v370, %v372
        %v375 = vsel %vm373, %v372, %v370
        %v376 = vlaneseq
        %v377 = vshrl.u32 %v376, 7
        %v378 = vsub.s32 5, %v377
        %v379 = vrot.slane %v241, %v378
        %v380 = vlaneseq
        %v381 = vshrl.u32 %v380, 7
        %v382 = vsub.s32 5, %v381
        %v383 = vrot.slane %v242, %v382
        %v384 = vmul.f32 %v374, %v379
        %v385 = vmul.f32 %v375, %v383
        %386 = vset.pattern.permute.xlu0 5
        %387 = vperm.xlu0 %386, %v240
        %v388 = vpop.permute.xlu0 %387
        %v390 = vmul.f32 %v384, %v388
        %v391 = vmul.f32 %v385, %v388
        %v392 = vadd.f32 %v367, %v390
        %v393 = vadd.f32 %v368, %v391
        %394 = vrot.lane.b32.xlu0 %v239, 98
        %v395 = vpop.permute.xlu0 %394
        %396 = vrot.lane.b32.xlu0 %v247, 98
        %v397 = vpop.permute.xlu0 %396
        %vm398 = vcmp.lt.s32.totalorder %v254, 98
        %v399 = vsel %vm398, %v395, %v397
        %v400 = vsel %vm398, %v397, %v395
        %v401 = vlaneseq
        %v402 = vshrl.u32 %v401, 7
        %v403 = vsub.s32 6, %v402
        %v404 = vrot.slane %v241, %v403
        %v405 = vlaneseq
        %v406 = vshrl.u32 %v405, 7
        %v407 = vsub.s32 6, %v406
        %v408 = vrot.slane %v242, %v407
        %v409 = vmul.f32 %v399, %v404
        %v410 = vmul.f32 %v400, %v408
        %411 = vset.pattern.permute.xlu0 6
        %412 = vperm.xlu0 %411, %v240
        %v413 = vpop.permute.xlu0 %412
        %v415 = vmul.f32 %v409, %v413
        %v416 = vmul.f32 %v410, %v413
        %v417 = vadd.f32 %v392, %v415
        %v418 = vadd.f32 %v393, %v416
        %419 = vrot.lane.b32.xlu0 %v239, 96
        %v420 = vpop.permute.xlu0 %419
        %421 = vrot.lane.b32.xlu0 %v247, 96
        %v422 = vpop.permute.xlu0 %421
        %vm423 = vcmp.lt.s32.totalorder %v254, 96
        %v424 = vsel %vm423, %v420, %v422
        %v425 = vsel %vm423, %v422, %v420
        %v426 = vlaneseq
        %v427 = vshrl.u32 %v426, 7
        %v428 = vsub.s32 7, %v427
        %v429 = vrot.slane %v241, %v428
        %v430 = vlaneseq
        %v431 = vshrl.u32 %v430, 7
        %v432 = vsub.s32 7, %v431
        %v433 = vrot.slane %v242, %v432
        %v434 = vmul.f32 %v424, %v429
        %v435 = vmul.f32 %v425, %v433
        %436 = vset.pattern.permute.xlu0 7
        %437 = vperm.xlu0 %436, %v240
        %v438 = vpop.permute.xlu0 %437
        %v440 = vmul.f32 %v434, %v438
        %v441 = vmul.f32 %v435, %v438
        %v442 = vadd.f32 %v417, %v440
        %v443 = vadd.f32 %v418, %v441
        %444 = vrot.lane.b32.xlu0 %v239, 94
        %v445 = vpop.permute.xlu0 %444
        %446 = vrot.lane.b32.xlu0 %v247, 94
        %v447 = vpop.permute.xlu0 %446
        %vm448 = vcmp.lt.s32.totalorder %v254, 94
        %v449 = vsel %vm448, %v445, %v447
        %v450 = vsel %vm448, %v447, %v445
        %v451 = vlaneseq
        %v452 = vshrl.u32 %v451, 7
        %v453 = vsub.s32 0, %v452
        %v454 = vrot.slane %v243, %v453
        %v455 = vlaneseq
        %v456 = vshrl.u32 %v455, 7
        %v457 = vsub.s32 0, %v456
        %v458 = vrot.slane %v244, %v457
        %v459 = vmul.f32 %v449, %v454
        %v460 = vmul.f32 %v450, %v458
        %461 = vset.pattern.permute.xlu0 8
        %462 = vperm.xlu0 %461, %v240
        %v463 = vpop.permute.xlu0 %462
        %v465 = vmul.f32 %v459, %v463
        %v466 = vmul.f32 %v460, %v463
        %v467 = vadd.f32 %v442, %v465
        %v468 = vadd.f32 %v443, %v466
        %470 = vset.pattern.permute.xlu0 0
        %471 = vperm.xlu0 %470, %v245
        %v472 = vpop.permute.xlu0 %471
        %v474 = vlaneseq
        %v475 = vshrl.u32 %v474, 7
        %v476 = vsub.s32 0, %v475
        %v477 = vrot.slane %v467, %v476
        %v478 = vlaneseq
        %v479 = vshrl.u32 %v478, 7
        %v480 = vsub.s32 0, %v479
        %v481 = vrot.slane %v468, %v480
        %v482 = vmul.f32 %v472, %v477
        %v483 = vmul.f32 %v472, %v481
        %v484 = vadd.f32 %v482, 0.0
        %v485 = vadd.f32 %v483, 0.0
        %486 = vset.pattern.permute.xlu0 1
        %487 = vperm.xlu0 %486, %v245
        %v488 = vpop.permute.xlu0 %487
        %v490 = vlaneseq
        %v491 = vshrl.u32 %v490, 7
        %v492 = vsub.s32 1, %v491
        %v493 = vrot.slane %v467, %v492
        %v494 = vlaneseq
        %v495 = vshrl.u32 %v494, 7
        %v496 = vsub.s32 1, %v495
        %v497 = vrot.slane %v468, %v496
        %v498 = vmul.f32 %v488, %v493
        %v499 = vmul.f32 %v488, %v497
        %v500 = vadd.f32 %v484, %v498
        %v501 = vadd.f32 %v485, %v499
        %502 = vset.pattern.permute.xlu0 2
        %503 = vperm.xlu0 %502, %v245
        %v504 = vpop.permute.xlu0 %503
        %v506 = vlaneseq
        %v507 = vshrl.u32 %v506, 7
        %v508 = vsub.s32 2, %v507
        %v509 = vrot.slane %v467, %v508
        %v510 = vlaneseq
        %v511 = vshrl.u32 %v510, 7
        %v512 = vsub.s32 2, %v511
        %v513 = vrot.slane %v468, %v512
        %v514 = vmul.f32 %v504, %v509
        %v515 = vmul.f32 %v504, %v513
        %v516 = vadd.f32 %v500, %v514
        %v517 = vadd.f32 %v501, %v515
        %518 = vset.pattern.permute.xlu0 3
        %519 = vperm.xlu0 %518, %v245
        %v520 = vpop.permute.xlu0 %519
        %v522 = vlaneseq
        %v523 = vshrl.u32 %v522, 7
        %v524 = vsub.s32 3, %v523
        %v525 = vrot.slane %v467, %v524
        %v526 = vlaneseq
        %v527 = vshrl.u32 %v526, 7
        %v528 = vsub.s32 3, %v527
        %v529 = vrot.slane %v468, %v528
        %v530 = vmul.f32 %v520, %v525
        %v531 = vmul.f32 %v520, %v529
        %v532 = vadd.f32 %v516, %v530
        %v533 = vadd.f32 %v517, %v531
        %v534 = vld [vmem:[%s4] sm:$0xff]
        %536 = vset.pattern.permute.xlu0 0
        %537 = vperm.xlu0 %536, %v534
        %v538 = vpop.permute.xlu0 %537
        %v540 = vadd.f32 %v532, %v538
        %v541 = vadd.f32 %v533, %v538
        %542 = vst [vmem:[%s232] sm:$0xff] %v540
        %543 = vst [vmem:[%s232 + $0x8] sm:$0xff] %v541
        %s544 = sand.u32 %s138, 1
        %s545 = scalar_lea.sflag [#allocation4], %s544
        %s546 = sand.u32 %s138, 1
        %s547 = smul.addr %s546, 16
        %s548 = scalar_lea.vmem [#allocation5], %s547
        // Predicated region
        $region45: #{tpu_custom_call.1} parent=39 // pred_check
          %p549 = pneg %p148
        $region46: #{tpu_custom_call.1} parent=39 // pred_check_branch
          %551 = sbr.rel (%p549) target = $region48
        $region47: #{tpu_custom_call.1} parent=39 // pred_region
          %s553 = ssub.s32 256, 256
          %554 = vsyncadd %s545, %s553
          %s555 = smul.addr %s20, 2
          %s556 = smul.addr %s555, 128
          %s557 = scalar_lea.hbm %s5, %s556
          %s559 = sshll.u32 %s548, 4
          %s560 = int_to_ptr.vmem [resolvable:$true] %s559
          %562 = dma.vmem_to_hbm [thread:$0]  %s560, 256, %s557, %s545
        $region48: #{tpu_custom_call.1} parent=39 // pred_fallthru
          _
      $region40: #{tpu_custom_call.1} parent=5 // pred_fallthru
        _
      %p563 = scmp.le.s32.totalorder 2, %s15
      // Predicated region
      $region49: #{tpu_custom_call.1} parent=5 // pred_check
        %p564 = pneg %p563
      $region50: #{tpu_custom_call.1} parent=5 // pred_check_branch
        %566 = sbr.rel (%p564) target = $region52
      $region51: #{tpu_custom_call.1} parent=5 // pred_region
        %s567 = ssub.s32 %s15, 2
        // Predicated region
        $region53: #{tpu_custom_call.1} parent=51 // pred_check
          %p568 = pneg %p154
        $region54: #{tpu_custom_call.1} parent=51 // pred_check_branch
          %570 = sbr.rel (%p568) target = $region56
        $region55: #{tpu_custom_call.1} parent=51 // pred_region
          %s571 = sand.u32 %s139, 1
          %s572 = scalar_lea.sflag [#allocation4], %s571
          %s573 = sand.u32 %s139, 1
          %s574 = smul.addr %s573, 16
          %s575 = scalar_lea.vmem [#allocation5], %s574
          %576 = dma.done %s572, 256
        $region56: #{tpu_custom_call.1} parent=51 // pred_fallthru
          _
      $region52: #{tpu_custom_call.1} parent=5 // pred_fallthru
        _
    $region6: #{tpu_custom_call.1} parent=1 // loop_footer
      %s19 = sadd.s32 1, %s15
    $region7: #{tpu_custom_call.1} parent=1 // loop_footer_branch
      %14 = sbr.rel target = $region3
    $region8: #{tpu_custom_call.1} parent=1 // loop_exit
      _
    %577 = vsyncpa [#allocation3], 1
    %s578 = scalar_lea.sflag [#allocation3], 1
    %579 = vsyncpa %s578, 1
    %580 = vsyncpa [#allocation4], 1
    %s581 = scalar_lea.sflag [#allocation4], 1
    %582 = vsyncpa %s581, 1

</llo_original>
